<compile_context>
chip_gen: v5e
topology: v5e:2x2
jax: 0.10.0
libtpu: 0.0.40
codegen_flags: <defaults>
</compile_context>

<pallas_src>
import jax
import jax.numpy as jnp
from jax.experimental import pallas as pl
from jax.experimental.pallas import tpu as pltpu

_LEAKY_SLOPE = 0.01  # nn.LeakyReLU default negative_slope


def _make_mlp_kernel(n_pieces, compute_dtype):
    """Kernel over one batch tile: refs = (x_0..x_{n-1}, w1, b1, w2, b2, out)."""

    def kernel(*refs):
        x_refs = refs[:n_pieces]
        w1_ref, b1_ref, w2_ref, b2_ref, o_ref = refs[n_pieces:]

        # torch.cat(x, -1) folded in-kernel: cheap lane copy, no HBM concat pass.
        if n_pieces == 1:
            xt = x_refs[0][...]
        else:
            xt = jnp.concatenate([r[...] for r in x_refs], axis=-1)
        if compute_dtype is not None:
            xt = xt.astype(compute_dtype)   # cast in-kernel, never as a wrapper HBM pass

        # Hidden layer: single MXU matmul against resident full W1, f32 accumulation.
        h = jnp.dot(xt, w1_ref[...], preferred_element_type=jnp.float32)
        h = h + b1_ref[...].astype(jnp.float32)          # (TB, H) + (1, H)
        h = jnp.maximum(h, _LEAKY_SLOPE * h)             # LeakyReLU, one VPU op

        # Output layer (no activation). Accumulate in f32, epilogue in f32.
        out = jnp.dot(h.astype(w2_ref.dtype), w2_ref[...],
                      preferred_element_type=jnp.float32)
        out = out + b2_ref[...].astype(jnp.float32)      # (TB, D_out) + (1, D_out)
        o_ref[...] = out.astype(o_ref.dtype)

    return kernel


def mlp_for_one_nb(x, w1, b1, w2, b2, *, block_batch=1024, compute_dtype=None):
    """Pallas forward for MLPForOneNB (hidden_layers=[H], last_activation=None).

    `x` may be a single (B, D_in) array or a tuple of arrays to be concatenated on
    the last axis (mirrors torch.cat(x, -1) in MLPForOneNB.forward); the concat is
    folded into the kernel instead of being materialized in HBM.
    Weights are stored (in_features, out_features): transpose of nn.Linear's layout.
    """
    if not isinstance(x, (tuple, list)):
        x = (x,)
    x = tuple(x)
    n_pieces = len(x)

    B = int(x[0].shape[0])
    widths = [int(xi.shape[-1]) for xi in x]
    D_in = sum(widths)
    assert w1.shape[0] == D_in, (w1.shape, D_in)
    H = int(w1.shape[1])
    D_out = int(w2.shape[1])
    out_dtype = x[0].dtype

    # Weights: optionally narrow the MXU operand dtype (tiny arrays; constant-folded
    # under jit). Inputs are cast inside the kernel, never as a wrapper HBM pass.
    if compute_dtype is not None:
        w1 = w1.astype(compute_dtype)
        w2 = w2.astype(compute_dtype)

    b1 = b1.reshape(1, H)
    b2 = b2.reshape(1, D_out)

    # Batch tile selection:
    #   * big tiles amortize the ~0.35 µs per-grid-step overhead,
    #   * cap at B//2 when possible so grid_b >= 2 (both v7x TCs get work),
    #   * round down to a multiple of 8 (never silently fall back to TB=B).
    TB = min(block_batch, B)
    if B >= 16 and TB > B // 2:
        TB = B // 2
    if TB != B:
        TB = max(8, TB - TB % 8)
    grid_b = pl.cdiv(B, TB)

    def x_spec(width):
        return pl.BlockSpec((TB, width), lambda i: (i, 0))

    def resident(shape):
        # Weights / biases: same block every grid step -> stay VMEM-resident.
        return pl.BlockSpec(shape, lambda i: (0,) * len(shape))

    in_specs = (
        [x_spec(w) for w in widths]
        + [resident((D_in, H)), resident((1, H)),
           resident((H, D_out)), resident((1, D_out))]
    )
    out_spec = pl.BlockSpec((TB, D_out), lambda i: (i, 0))

    itemsize = lambda a: a.size * a.dtype.itemsize
    bytes_accessed = (
        sum(itemsize(xi) for xi in x)
        + itemsize(w1) + itemsize(b1) + itemsize(w2) + itemsize(b2)
        + B * D_out * jnp.dtype(out_dtype).itemsize
    )
    cost = pl.CostEstimate(
        flops=2 * B * (D_in * H + H * D_out),
        transcendentals=0,
        bytes_accessed=bytes_accessed,
    )

    return pl.pallas_call(
        _make_mlp_kernel(n_pieces, compute_dtype),
        out_shape=jax.ShapeDtypeStruct((B, D_out), out_dtype),
        grid=(grid_b,),
        in_specs=in_specs,
        out_specs=out_spec,
        compiler_params=pltpu.CompilerParams(
            dimension_semantics=("parallel",),   # batch tiles shard across TCs on v7x
        ),
        cost_estimate=cost,
    )(*x, w1, b1, w2, b2)


def init_params(key, input_size, output_size, hidden=128, dtype=jnp.float32):
    """nn.Linear default init: U(-1/sqrt(fan_in), +1/sqrt(fan_in)); weights stored (in, out)."""
    k1, k2, k3, k4 = jax.random.split(key, 4)
    bound1 = 1.0 / (input_size ** 0.5)
    bound2 = 1.0 / (hidden ** 0.5)
    w1 = jax.random.uniform(k1, (input_size, hidden), dtype, -bound1, bound1)
    b1 = jax.random.uniform(k2, (1, hidden), dtype, -bound1, bound1)
    w2 = jax.random.uniform(k3, (hidden, output_size), dtype, -bound2, bound2)
    b2 = jax.random.uniform(k4, (1, output_size), dtype, -bound2, bound2)
    return w1, b1, w2, b2


def reference_mlp(x, w1, b1, w2, b2):
    if isinstance(x, (tuple, list)):
        x = jnp.concatenate(tuple(x), axis=-1)
    h = x @ w1 + b1
    h = jnp.where(h > 0, h, _LEAKY_SLOPE * h)
    return h @ w2 + b2


if __name__ == "__main__":
    key = jax.random.PRNGKey(0)
    kx, kx2, kp, kr = jax.random.split(key, 4)

    # Small shapes consistent with the module (MLP on (batch, input_size)).
    batch = 256
    input_size = 32
    hidden = 128          # default hidden_layers=[128]
    output_size = 16

    # Exercise the tuple-input path of forward(): two halves concatenated on -1,
    # with the concat folded into the kernel.
    x_a = jax.random.normal(kx, (batch, input_size // 2), jnp.float32)
    x_b = jax.random.normal(kx2, (batch, input_size // 2), jnp.float32)
    x = (x_a, x_b)

    w1, b1, w2, b2 = init_params(kp, input_size, output_size, hidden)

    # grid >= 2 tiles (TB capped at B//2) -> exercises pipelining + megacore sharding.
    out = mlp_for_one_nb(x, w1, b1, w2, b2)
    out = jax.block_until_ready(out)

    ref = reference_mlp(x, w1, b1, w2, b2)
    assert out.shape == (batch, output_size), out.shape
    assert jnp.allclose(out, ref, atol=1e-4, rtol=1e-4), "mismatch vs reference"

    # Ragged-tile path: B not divisible by TB (relies on Pallas OOB-row masking;
    # rows are independent so results are unaffected).
    batch_r = 200
    x_r = jax.random.normal(kr, (batch_r, input_size), jnp.float32)
    out_r = jax.block_until_ready(
        mlp_for_one_nb(x_r, w1, b1, w2, b2, block_batch=96))
    ref_r = reference_mlp(x_r, w1, b1, w2, b2)
    assert out_r.shape == (batch_r, output_size), out_r.shape
    assert jnp.allclose(out_r, ref_r, atol=1e-4, rtol=1e-4), "ragged mismatch"

    # TODO(synk): on v6e/v7x, if the producer already emits bf16 activations, pass
    # compute_dtype=jnp.bfloat16 (halves HBM reads for x/W); loosen tolerances then.

    print("KERNEL_OK")
</pallas_src>

<mosaic_0001>
module attributes {stable_mosaic.version = 11 : i64} {
  func.func @kernel(%arg0: i32, %arg1: memref<128x16xf32, #tpu.memory_space<vmem>>, %arg2: memref<128x16xf32, #tpu.memory_space<vmem>>, %arg3: memref<32x128xf32, #tpu.memory_space<vmem>>, %arg4: memref<1x128xf32, #tpu.memory_space<vmem>>, %arg5: memref<128x16xf32, #tpu.memory_space<vmem>>, %arg6: memref<1x16xf32, #tpu.memory_space<vmem>>, %arg7: memref<128x16xf32, #tpu.memory_space<vmem>>) attributes {dimension_semantics = [#tpu.dimension_semantics<parallel>], iteration_bounds = array<i64: 2>, scalar_prefetch = 0 : i64, scratch_operands = 0 : i64, tpu.core_type = #tpu.core_type<tc>, window_params = [{transform_indices = @transform_0, window_bounds = array<i64: 128, 16>}, {transform_indices = @transform_1, window_bounds = array<i64: 128, 16>}, {pipeline_mode = #tpu.pipeline_mode<synchronous>, transform_indices = @transform_2, window_bounds = array<i64: 32, 128>}, {pipeline_mode = #tpu.pipeline_mode<synchronous>, transform_indices = @transform_3, window_bounds = array<i64: 1, 128>}, {pipeline_mode = #tpu.pipeline_mode<synchronous>, transform_indices = @transform_4, window_bounds = array<i64: 128, 16>}, {pipeline_mode = #tpu.pipeline_mode<synchronous>, transform_indices = @transform_5, window_bounds = array<i64: 1, 16>}, {transform_indices = @transform_6, window_bounds = array<i64: 128, 16>}]} {
    %c0 = arith.constant 0 : index
    %c0_0 = arith.constant 0 : index
    %0 = vector.load %arg1[%c0, %c0_0] : memref<128x16xf32, #tpu.memory_space<vmem>>, vector<128x16xf32>
    %c0_1 = arith.constant 0 : index
    %c0_2 = arith.constant 0 : index
    %1 = vector.load %arg2[%c0_1, %c0_2] : memref<128x16xf32, #tpu.memory_space<vmem>>, vector<128x16xf32>
    %2 = tpu.concatenate %0, %1 in 1 : vector<128x16xf32>, vector<128x16xf32> -> vector<128x32xf32>
    %c0_3 = arith.constant 0 : index
    %c0_4 = arith.constant 0 : index
    %3 = vector.load %arg3[%c0_3, %c0_4] : memref<32x128xf32, #tpu.memory_space<vmem>>, vector<32x128xf32>
    %cst = arith.constant dense<0.000000e+00> : vector<128x128xf32>
    %4 = tpu.matmul %2, %3, %cst {dimension_numbers = #tpu.dot_dimension_numbers<[1], [0], [0], [1], [0, 0, 1, 1], [], []>} : vector<128x32xf32>, vector<32x128xf32>, vector<128x128xf32> -> vector<128x128xf32>
    %c0_5 = arith.constant 0 : index
    %c0_6 = arith.constant 0 : index
    %5 = vector.load %arg4[%c0_5, %c0_6] : memref<1x128xf32, #tpu.memory_space<vmem>>, vector<1x128xf32>
    %6 = vector.broadcast %5 : vector<1x128xf32> to vector<128x128xf32>
    %7 = arith.addf %4, %6 : vector<128x128xf32>
    %cst_7 = arith.constant 0.00999999977 : f32
    %8 = vector.broadcast %cst_7 : f32 to vector<128x128xf32>
    %9 = arith.mulf %8, %7 : vector<128x128xf32>
    %10 = arith.maximumf %7, %9 : vector<128x128xf32>
    %c0_8 = arith.constant 0 : index
    %c0_9 = arith.constant 0 : index
    %11 = vector.load %arg5[%c0_8, %c0_9] : memref<128x16xf32, #tpu.memory_space<vmem>>, vector<128x16xf32>
    %cst_10 = arith.constant dense<0.000000e+00> : vector<128x16xf32>
    %12 = tpu.matmul %10, %11, %cst_10 {dimension_numbers = #tpu.dot_dimension_numbers<[1], [0], [0], [1], [0, 0, 1, 1], [], []>} : vector<128x128xf32>, vector<128x16xf32>, vector<128x16xf32> -> vector<128x16xf32>
    %c0_11 = arith.constant 0 : index
    %c0_12 = arith.constant 0 : index
    %13 = vector.load %arg6[%c0_11, %c0_12] : memref<1x16xf32, #tpu.memory_space<vmem>>, vector<1x16xf32>
    %14 = vector.broadcast %13 : vector<1x16xf32> to vector<128x16xf32>
    %15 = arith.addf %12, %14 : vector<128x16xf32>
    %c0_13 = arith.constant 0 : index
    %c0_14 = arith.constant 0 : index
    %16 = vector.load %arg7[%c0_13, %c0_14] : memref<128x16xf32, #tpu.memory_space<vmem>>, vector<128x16xf32>
    tpu.vector_store %arg7[%c0_13, %c0_14], %15 {strides = array<i32>} : memref<128x16xf32, #tpu.memory_space<vmem>>, vector<128x16xf32>,
    return
  }
  func.func @transform_0(%arg0: i32) -> (i32, i32) {
    %c0_i32 = arith.constant 0 : i32
    %c0_i32_0 = arith.constant 0 : i32
    return %arg0, %c0_i32 : i32, i32
  }
  func.func @transform_1(%arg0: i32) -> (i32, i32) {
    %c0_i32 = arith.constant 0 : i32
    %c0_i32_0 = arith.constant 0 : i32
    return %arg0, %c0_i32 : i32, i32
  }
  func.func @transform_2(%arg0: i32) -> (i32, i32) {
    %c0_i32 = arith.constant 0 : i32
    %c0_i32_0 = arith.constant 0 : i32
    %c0_i32_1 = arith.constant 0 : i32
    return %c0_i32, %c0_i32_0 : i32, i32
  }
  func.func @transform_3(%arg0: i32) -> (i32, i32) {
    %c0_i32 = arith.constant 0 : i32
    %c0_i32_0 = arith.constant 0 : i32
    %c0_i32_1 = arith.constant 0 : i32
    return %c0_i32, %c0_i32_0 : i32, i32
  }
  func.func @transform_4(%arg0: i32) -> (i32, i32) {
    %c0_i32 = arith.constant 0 : i32
    %c0_i32_0 = arith.constant 0 : i32
    %c0_i32_1 = arith.constant 0 : i32
    return %c0_i32, %c0_i32_0 : i32, i32
  }
  func.func @transform_5(%arg0: i32) -> (i32, i32) {
    %c0_i32 = arith.constant 0 : i32
    %c0_i32_0 = arith.constant 0 : i32
    %c0_i32_1 = arith.constant 0 : i32
    return %c0_i32, %c0_i32_0 : i32, i32
  }
  func.func @transform_6(%arg0: i32) -> (i32, i32) {
    %c0_i32 = arith.constant 0 : i32
    %c0_i32_0 = arith.constant 0 : i32
    return %arg0, %c0_i32 : i32, i32
  }
}

</mosaic_0001>

<llo_original>
// kernel: tpu_custom_call.1
$region0: #{tpu_custom_call.1}
  #allocation0 [shape = 'u32[]', space=smem, size = 0x4, offset = 0x4, fixed_abs, tag = 'smem constant byte address 0x4 - core index']
  #allocation1 [shape = 'u32[72,128]{1,0:T(1,128)}', space=vmem, size = 0x9000, scoped, tag = 'internal scratch']
  %s0 = inlined_call_operand.vmem [shape: f32[256,16], index: 0, kind: input, shape index: {}]
  %s1 = inlined_call_operand.vmem [shape: f32[256,16], index: 1, kind: input, shape index: {}]
  %s2 = inlined_call_operand.vmem [shape: f32[32,128], index: 2, kind: input, shape index: {}]
  %s3 = inlined_call_operand.vmem [shape: f32[1,128], index: 3, kind: input, shape index: {}]
  %s4 = inlined_call_operand.vmem [shape: f32[128,16], index: 4, kind: input, shape index: {}]
  %s5 = inlined_call_operand.vmem [shape: f32[1,16], index: 5, kind: input, shape index: {}]
  %s6 = inlined_call_operand.vmem [shape: f32[256,16], index: 6, kind: output, shape index: {}]
  %s7 = sld [smem:[#allocation0]]
  $region57: #{tpu_custom_call.1} parent=0
    _
  %s9 = ssub.s32 1, %s7
  %s10 = scalar_select 0, %s9, %s7
  loop: start=0, step=1, limit=4
  $region2: #{tpu_custom_call.1} parent=0 // loop_pre_header
    _
  $region3: #{tpu_custom_call.1} parent=0 // loop_header
    %s12 = sphi 0, %s16
    %p13 = scmp.ge.s32.totalorder %s12, 4
    %s22 = sphi 0, %s24
    %s25 = sphi 0, %s22
    %s26 = sphi 0, %s25
    %s42 = sphi 0, %s26
    %s48 = sphi 0, %s50
    %s51 = sphi 0, %s48
    %s52 = sphi 0, %s51
    %s68 = sphi 0, %s52
    %s72 = sphi 0, %s72
    %s74 = sphi 0, %s72
    %s75 = sphi 0, %s74
    %s89 = sphi 0, %s75
    %s93 = sphi 0, %s93
    %s95 = sphi 0, %s93
    %s96 = sphi 0, %s95
    %s110 = sphi 0, %s96
    %s114 = sphi 0, %s114
    %s116 = sphi 0, %s114
    %s117 = sphi 0, %s116
    %s131 = sphi 0, %s117
    %s135 = sphi 0, %s135
    %s137 = sphi 0, %s135
    %s138 = sphi 0, %s137
    %s152 = sphi 0, %s138
    %s158 = sphi 0, %s160
    %s161 = sphi 0, %s158
    %s162 = sphi 0, %s161
    %s178 = sphi 0, %s162
  $region4: #{tpu_custom_call.1} parent=0 // loop_header_branch
    %15 = sbr.rel (%p13) target = $region8
  $region5: #{tpu_custom_call.1} parent=0 // loop_body
    %s17 = ssub.s32 %s12, 1
    %s18 = ssub.s32 %s12, 2
    %s19 = sadd.s32 %s12, 1
    %s20 = ssub.s32 %s12, %s19
    %p21 = scmp.eq.s32.totalorder %s20, 0
    %s23 = sadd.s32 %s22, 1
    %s24 = scalar_select %p21, %s22, %s23
    %p27 = pneg %p21
    %p28 = scmp.eq.s32.totalorder %s12, 1
    %p29 = por %p27, %p28
    %p30 = scmp.ne.s32.totalorder %s22, %s25
    %p31 = scmp.eq.s32.totalorder %s12, 0
    %p32 = por %p30, %p31
    %p33 = scmp.ne.s32.totalorder %s22, %s25
    %p34 = scmp.eq.s32.totalorder %s17, 1
    %p35 = por %p33, %p34
    %p36 = scmp.ne.s32.totalorder %s25, %s26
    %p37 = scmp.eq.s32.totalorder %s17, 0
    %p38 = por %p36, %p37
    %p39 = scmp.ne.s32.totalorder %s25, %s26
    %p40 = scmp.eq.s32.totalorder %s18, 1
    %p41 = por %p39, %p40
    %p43 = scmp.ne.s32.totalorder %s26, %s42
    %p44 = scmp.eq.s32.totalorder %s18, 0
    %p45 = por %p43, %p44
    %s46 = ssub.s32 %s12, %s19
    %p47 = scmp.eq.s32.totalorder %s46, 0
    %s49 = sadd.s32 %s48, 1
    %s50 = scalar_select %p47, %s48, %s49
    %p53 = pneg %p47
    %p54 = scmp.eq.s32.totalorder %s12, 1
    %p55 = por %p53, %p54
    %p56 = scmp.ne.s32.totalorder %s48, %s51
    %p57 = scmp.eq.s32.totalorder %s12, 0
    %p58 = por %p56, %p57
    %p59 = scmp.ne.s32.totalorder %s48, %s51
    %p60 = scmp.eq.s32.totalorder %s17, 1
    %p61 = por %p59, %p60
    %p62 = scmp.ne.s32.totalorder %s51, %s52
    %p63 = scmp.eq.s32.totalorder %s17, 0
    %p64 = por %p62, %p63
    %p65 = scmp.ne.s32.totalorder %s51, %s52
    %p66 = scmp.eq.s32.totalorder %s18, 1
    %p67 = por %p65, %p66
    %p69 = scmp.ne.s32.totalorder %s52, %s68
    %p70 = scmp.eq.s32.totalorder %s18, 0
    %p71 = por %p69, %p70
    %s73 = sadd.s32 %s72, 1
    %p76 = scmp.eq.s32.totalorder %s12, 1
    %p77 = scmp.ne.s32.totalorder %s72, %s74
    %p78 = scmp.eq.s32.totalorder %s12, 0
    %p79 = por %p77, %p78
    %p80 = scmp.ne.s32.totalorder %s72, %s74
    %p81 = scmp.eq.s32.totalorder %s17, 1
    %p82 = por %p80, %p81
    %p83 = scmp.ne.s32.totalorder %s74, %s75
    %p84 = scmp.eq.s32.totalorder %s17, 0
    %p85 = por %p83, %p84
    %p86 = scmp.ne.s32.totalorder %s74, %s75
    %p87 = scmp.eq.s32.totalorder %s18, 1
    %p88 = por %p86, %p87
    %p90 = scmp.ne.s32.totalorder %s75, %s89
    %p91 = scmp.eq.s32.totalorder %s18, 0
    %p92 = por %p90, %p91
    %s94 = sadd.s32 %s93, 1
    %p97 = scmp.eq.s32.totalorder %s12, 1
    %p98 = scmp.ne.s32.totalorder %s93, %s95
    %p99 = scmp.eq.s32.totalorder %s12, 0
    %p100 = por %p98, %p99
    %p101 = scmp.ne.s32.totalorder %s93, %s95
    %p102 = scmp.eq.s32.totalorder %s17, 1
    %p103 = por %p101, %p102
    %p104 = scmp.ne.s32.totalorder %s95, %s96
    %p105 = scmp.eq.s32.totalorder %s17, 0
    %p106 = por %p104, %p105
    %p107 = scmp.ne.s32.totalorder %s95, %s96
    %p108 = scmp.eq.s32.totalorder %s18, 1
    %p109 = por %p107, %p108
    %p111 = scmp.ne.s32.totalorder %s96, %s110
    %p112 = scmp.eq.s32.totalorder %s18, 0
    %p113 = por %p111, %p112
    %s115 = sadd.s32 %s114, 1
    %p118 = scmp.eq.s32.totalorder %s12, 1
    %p119 = scmp.ne.s32.totalorder %s114, %s116
    %p120 = scmp.eq.s32.totalorder %s12, 0
    %p121 = por %p119, %p120
    %p122 = scmp.ne.s32.totalorder %s114, %s116
    %p123 = scmp.eq.s32.totalorder %s17, 1
    %p124 = por %p122, %p123
    %p125 = scmp.ne.s32.totalorder %s116, %s117
    %p126 = scmp.eq.s32.totalorder %s17, 0
    %p127 = por %p125, %p126
    %p128 = scmp.ne.s32.totalorder %s116, %s117
    %p129 = scmp.eq.s32.totalorder %s18, 1
    %p130 = por %p128, %p129
    %p132 = scmp.ne.s32.totalorder %s117, %s131
    %p133 = scmp.eq.s32.totalorder %s18, 0
    %p134 = por %p132, %p133
    %s136 = sadd.s32 %s135, 1
    %p139 = scmp.eq.s32.totalorder %s12, 1
    %p140 = scmp.ne.s32.totalorder %s135, %s137
    %p141 = scmp.eq.s32.totalorder %s12, 0
    %p142 = por %p140, %p141
    %p143 = scmp.ne.s32.totalorder %s135, %s137
    %p144 = scmp.eq.s32.totalorder %s17, 1
    %p145 = por %p143, %p144
    %p146 = scmp.ne.s32.totalorder %s137, %s138
    %p147 = scmp.eq.s32.totalorder %s17, 0
    %p148 = por %p146, %p147
    %p149 = scmp.ne.s32.totalorder %s137, %s138
    %p150 = scmp.eq.s32.totalorder %s18, 1
    %p151 = por %p149, %p150
    %p153 = scmp.ne.s32.totalorder %s138, %s152
    %p154 = scmp.eq.s32.totalorder %s18, 0
    %p155 = por %p153, %p154
    %s156 = ssub.s32 %s12, %s19
    %p157 = scmp.eq.s32.totalorder %s156, 0
    %s159 = sadd.s32 %s158, 1
    %s160 = scalar_select %p157, %s158, %s159
    %p163 = pneg %p157
    %p164 = scmp.eq.s32.totalorder %s12, 1
    %p165 = por %p163, %p164
    %p166 = scmp.ne.s32.totalorder %s158, %s161
    %p167 = scmp.eq.s32.totalorder %s12, 0
    %p168 = por %p166, %p167
    %p169 = scmp.ne.s32.totalorder %s158, %s161
    %p170 = scmp.eq.s32.totalorder %s17, 1
    %p171 = por %p169, %p170
    %p172 = scmp.ne.s32.totalorder %s161, %s162
    %p173 = scmp.eq.s32.totalorder %s17, 0
    %p174 = por %p172, %p173
    %p175 = scmp.ne.s32.totalorder %s161, %s162
    %p176 = scmp.eq.s32.totalorder %s18, 1
    %p177 = por %p175, %p176
    %p179 = scmp.ne.s32.totalorder %s162, %s178
    %p180 = scmp.eq.s32.totalorder %s18, 0
    %p181 = por %p179, %p180
    %p182 = scmp.le.s32.totalorder 1, %s12
    %p183 = scmp.lt.s32.totalorder %s12, 3
    %p184 = pnand %p182, %p183
    %p185 = pneg %p184
    // Predicated region
    $region9: #{tpu_custom_call.1} parent=5 // pred_check
      _
    $region10: #{tpu_custom_call.1} parent=5 // pred_check_branch
      %187 = sbr.rel (%p184) target = $region12
    $region11: #{tpu_custom_call.1} parent=5 // pred_region
      %s188 = ssub.s32 %s12, 1
      // Predicated region
      $region13: #{tpu_custom_call.1} parent=11 // pred_check
        %p189 = pneg %p85
      $region14: #{tpu_custom_call.1} parent=11 // pred_check_branch
        %191 = sbr.rel (%p189) target = $region16
      $region15: #{tpu_custom_call.1} parent=11 // pred_region
        _
      $region16: #{tpu_custom_call.1} parent=11 // pred_fallthru
        _
      // Predicated region
      $region17: #{tpu_custom_call.1} parent=11 // pred_check
        %p192 = pneg %p106
      $region18: #{tpu_custom_call.1} parent=11 // pred_check_branch
        %194 = sbr.rel (%p192) target = $region20
      $region19: #{tpu_custom_call.1} parent=11 // pred_region
        _
      $region20: #{tpu_custom_call.1} parent=11 // pred_fallthru
        _
      // Predicated region
      $region21: #{tpu_custom_call.1} parent=11 // pred_check
        %p195 = pneg %p127
      $region22: #{tpu_custom_call.1} parent=11 // pred_check_branch
        %197 = sbr.rel (%p195) target = $region24
      $region23: #{tpu_custom_call.1} parent=11 // pred_region
        _
      $region24: #{tpu_custom_call.1} parent=11 // pred_fallthru
        _
      // Predicated region
      $region25: #{tpu_custom_call.1} parent=11 // pred_check
        %p198 = pneg %p148
      $region26: #{tpu_custom_call.1} parent=11 // pred_check_branch
        %200 = sbr.rel (%p198) target = $region28
      $region27: #{tpu_custom_call.1} parent=11 // pred_region
        _
      $region28: #{tpu_custom_call.1} parent=11 // pred_fallthru
        _
    $region12: #{tpu_custom_call.1} parent=5 // pred_fallthru
      _
    %p201 = scmp.lt.s32.totalorder %s12, 2
    // Predicated region
    $region29: #{tpu_custom_call.1} parent=5 // pred_check
      %p202 = pneg %p201
    $region30: #{tpu_custom_call.1} parent=5 // pred_check_branch
      %204 = sbr.rel (%p202) target = $region32
    $region31: #{tpu_custom_call.1} parent=5 // pred_region
      // Predicated region
      $region33: #{tpu_custom_call.1} parent=31 // pred_check
        %p205 = pneg %p32
      $region34: #{tpu_custom_call.1} parent=31 // pred_check_branch
        %207 = sbr.rel (%p205) target = $region36
      $region35: #{tpu_custom_call.1} parent=31 // pred_region
        %s208 = smul.u32 16, %s12
        %p209 = scmp.lt.s32.totalorder %s208, 31
        %s210 = scalar_select %p209, %s208, 31
        %s211 = smul.addr %s210, 8
        %s212 = scalar_lea.vmem %s0, %s211
        %s213 = smul.u32 16, %s12
      $region36: #{tpu_custom_call.1} parent=31 // pred_fallthru
        _
      // Predicated region
      $region37: #{tpu_custom_call.1} parent=31 // pred_check
        %p214 = pneg %p58
      $region38: #{tpu_custom_call.1} parent=31 // pred_check_branch
        %216 = sbr.rel (%p214) target = $region40
      $region39: #{tpu_custom_call.1} parent=31 // pred_region
        %s217 = smul.u32 16, %s12
        %p218 = scmp.lt.s32.totalorder %s217, 31
        %s219 = scalar_select %p218, %s217, 31
        %s220 = smul.addr %s219, 8
        %s221 = scalar_lea.vmem %s1, %s220
        %s222 = smul.u32 16, %s12
      $region40: #{tpu_custom_call.1} parent=31 // pred_fallthru
        _
    $region32: #{tpu_custom_call.1} parent=5 // pred_fallthru
      _
    %p223 = scmp.le.s32.totalorder 1, %s12
    %p224 = scmp.lt.s32.totalorder %s12, 3
    %p225 = pnand %p223, %p224
    %p226 = pneg %p225
    // Predicated region
    $region41: #{tpu_custom_call.1} parent=5 // pred_check
      _
    $region42: #{tpu_custom_call.1} parent=5 // pred_check_branch
      %228 = sbr.rel (%p225) target = $region44
    $region43: #{tpu_custom_call.1} parent=5 // pred_region
      %s229 = ssub.s32 %s12, 1
      %s230 = smul.u32 16, %s17
      %p231 = scmp.lt.s32.totalorder %s230, 31
      %s232 = scalar_select %p231, %s230, 31
      %s233 = smul.addr %s232, 8
      %s234 = scalar_lea.vmem %s0, %s233
      %p235 = pneg %p38
      %p236 = pneg %p35
      %s237 = smul.u32 16, %s17
      %p238 = scmp.lt.s32.totalorder %s237, 31
      %s239 = scalar_select %p238, %s237, 31
      %s240 = smul.addr %s239, 8
      %s241 = scalar_lea.vmem %s1, %s240
      %p242 = pneg %p64
      %p243 = pneg %p61
      %p244 = pneg %p85
      %p245 = pneg %p82
      %p246 = pneg %p106
      %p247 = pneg %p103
      %p248 = pneg %p127
      %p249 = pneg %p124
      %p250 = pneg %p148
      %p251 = pneg %p145
      %p252 = pneg %p174
      %p253 = pneg %p171
      %s254 = smul.u32 16, %s17
      %p255 = scmp.lt.s32.totalorder %s254, 31
      %s256 = scalar_select %p255, %s254, 31
      %s257 = smul.addr %s256, 8
      %s258 = scalar_lea.vmem %s6, %s257
      %s259 = smul.u32 16, %s17
      %p260 = scmp.lt.s32.totalorder %s259, 31
      %s261 = scalar_select %p260, %s259, 31
      %s262 = smul.addr %s261, 8
      %s263 = scalar_lea.vmem %s0, %s262
      %s264 = smul.u32 16, %s17
      %s265 = smul.u32 16, %s17
      %p266 = scmp.lt.s32.totalorder %s265, 31
      %s267 = scalar_select %p266, %s265, 31
      %s268 = smul.addr %s267, 8
      %s269 = scalar_lea.vmem %s1, %s268
      %s270 = smul.u32 16, %s17
      %s271 = smul.u32 16, %s17
      %p272 = scmp.lt.s32.totalorder %s271, 31
      %s273 = scalar_select %p272, %s271, 31
      %s274 = smul.addr %s273, 8
      %s275 = scalar_lea.vmem %s6, %s274
      %s276 = smul.u32 16, %s17
      %v277 = vld [vmem:[%s263] sm:$0xff]
      %v278 = vld [vmem:[%s263 + $0x8] sm:$0xff]
      %v279 = vld [vmem:[%s263 + $0x10] sm:$0xff]
      %v280 = vld [vmem:[%s263 + $0x18] sm:$0xff]
      %v281 = vld [vmem:[%s263 + $0x20] sm:$0xff]
      %v282 = vld [vmem:[%s263 + $0x28] sm:$0xff]
      %v283 = vld [vmem:[%s263 + $0x30] sm:$0xff]
      %v284 = vld [vmem:[%s263 + $0x38] sm:$0xff]
      %v285 = vld [vmem:[%s263 + $0x40] sm:$0xff]
      %v286 = vld [vmem:[%s263 + $0x48] sm:$0xff]
      %v287 = vld [vmem:[%s263 + $0x50] sm:$0xff]
      %v288 = vld [vmem:[%s263 + $0x58] sm:$0xff]
      %v289 = vld [vmem:[%s263 + $0x60] sm:$0xff]
      %v290 = vld [vmem:[%s263 + $0x68] sm:$0xff]
      %v291 = vld [vmem:[%s263 + $0x70] sm:$0xff]
      %v292 = vld [vmem:[%s263 + $0x78] sm:$0xff]
      %v293 = vld [vmem:[%s269] sm:$0xff]
      %v294 = vld [vmem:[%s269 + $0x8] sm:$0xff]
      %v295 = vld [vmem:[%s269 + $0x10] sm:$0xff]
      %v296 = vld [vmem:[%s269 + $0x18] sm:$0xff]
      %v297 = vld [vmem:[%s269 + $0x20] sm:$0xff]
      %v298 = vld [vmem:[%s269 + $0x28] sm:$0xff]
      %v299 = vld [vmem:[%s269 + $0x30] sm:$0xff]
      %v300 = vld [vmem:[%s269 + $0x38] sm:$0xff]
      %v301 = vld [vmem:[%s269 + $0x40] sm:$0xff]
      %v302 = vld [vmem:[%s269 + $0x48] sm:$0xff]
      %v303 = vld [vmem:[%s269 + $0x50] sm:$0xff]
      %v304 = vld [vmem:[%s269 + $0x58] sm:$0xff]
      %v305 = vld [vmem:[%s269 + $0x60] sm:$0xff]
      %v306 = vld [vmem:[%s269 + $0x68] sm:$0xff]
      %v307 = vld [vmem:[%s269 + $0x70] sm:$0xff]
      %v308 = vld [vmem:[%s269 + $0x78] sm:$0xff]
      %325 = vrot.lane.b32.xlu0 %v293, 16
      %v326 = vpop.permute.xlu0 %325
      %327 = vrot.lane.b32.xlu0 %v294, 16
      %v328 = vpop.permute.xlu0 %327
      %329 = vrot.lane.b32.xlu0 %v295, 16
      %v330 = vpop.permute.xlu0 %329
      %331 = vrot.lane.b32.xlu0 %v296, 16
      %v332 = vpop.permute.xlu0 %331
      %333 = vrot.lane.b32.xlu0 %v297, 16
      %v334 = vpop.permute.xlu0 %333
      %335 = vrot.lane.b32.xlu0 %v298, 16
      %v336 = vpop.permute.xlu0 %335
      %337 = vrot.lane.b32.xlu0 %v299, 16
      %v338 = vpop.permute.xlu0 %337
      %339 = vrot.lane.b32.xlu0 %v300, 16
      %v340 = vpop.permute.xlu0 %339
      %341 = vrot.lane.b32.xlu0 %v301, 16
      %v342 = vpop.permute.xlu0 %341
      %343 = vrot.lane.b32.xlu0 %v302, 16
      %v344 = vpop.permute.xlu0 %343
      %345 = vrot.lane.b32.xlu0 %v303, 16
      %v346 = vpop.permute.xlu0 %345
      %347 = vrot.lane.b32.xlu0 %v304, 16
      %v348 = vpop.permute.xlu0 %347
      %349 = vrot.lane.b32.xlu0 %v305, 16
      %v350 = vpop.permute.xlu0 %349
      %351 = vrot.lane.b32.xlu0 %v306, 16
      %v352 = vpop.permute.xlu0 %351
      %353 = vrot.lane.b32.xlu0 %v307, 16
      %v354 = vpop.permute.xlu0 %353
      %355 = vrot.lane.b32.xlu0 %v308, 16
      %v356 = vpop.permute.xlu0 %355
      %vm373 = vcmask 130048
      %v374 = vsel %vm373, %v277, %v326
      %v375 = vsel %vm373, %v278, %v328
      %v376 = vsel %vm373, %v279, %v330
      %v377 = vsel %vm373, %v280, %v332
      %v378 = vsel %vm373, %v281, %v334
      %v379 = vsel %vm373, %v282, %v336
      %v380 = vsel %vm373, %v283, %v338
      %v381 = vsel %vm373, %v284, %v340
      %v382 = vsel %vm373, %v285, %v342
      %v383 = vsel %vm373, %v286, %v344
      %v384 = vsel %vm373, %v287, %v346
      %v385 = vsel %vm373, %v288, %v348
      %v386 = vsel %vm373, %v289, %v350
      %v387 = vsel %vm373, %v290, %v352
      %v388 = vsel %vm373, %v291, %v354
      %v389 = vsel %vm373, %v292, %v356
      %v390 = vld [vmem:[%s2] sm:$0xff]
      %v391 = vld [vmem:[%s2 + $0x8] sm:$0xff]
      %v392 = vld [vmem:[%s2 + $0x10] sm:$0xff]
      %v393 = vld [vmem:[%s2 + $0x18] sm:$0xff]
      %v394 = vld [vmem:[%s3] sm:$0x1]
      %v396 = vperm.slane %v394, 0
      %vm398 = vcmask 261120
      %v400 = vsel %vm398, %v374, 0
      %v403 = vsel %vm398, %v375, 0
      %v406 = vsel %vm398, %v376, 0
      %v409 = vsel %vm398, %v377, 0
      %v412 = vsel %vm398, %v378, 0
      %v415 = vsel %vm398, %v379, 0
      %v418 = vsel %vm398, %v380, 0
      %v421 = vsel %vm398, %v381, 0
      %v424 = vsel %vm398, %v382, 0
      %v427 = vsel %vm398, %v383, 0
      %v430 = vsel %vm398, %v384, 0
      %v433 = vsel %vm398, %v385, 0
      %v436 = vsel %vm398, %v386, 0
      %v439 = vsel %vm398, %v387, 0
      %v442 = vsel %vm398, %v388, 0
      %v445 = vsel %vm398, %v389, 0
      %447 = vmatpush.msra.mxu0 0.0
      %448 = vmatpush.msra.mxu0 0.0
      %449 = vmatpush.msra.mxu0 0.0
      %450 = vmatpush.msra.mxu0 0.0
      %451 = vmatpush.msra.mxu0 0.0
      %452 = vmatpush.msra.mxu0 0.0
      %453 = vmatpush.msra.mxu0 0.0
      %454 = vmatpush.msra.mxu0 0.0
      %455 = vmatpush.msra.mxu0 0.0
      %456 = vmatpush.msra.mxu0 0.0
      %457 = vmatpush.msra.mxu0 0.0
      %458 = vmatpush.msra.mxu0 0.0
      %459 = vmatpush.msra.mxu0 %v393
      %460 = vmatpush.msra.mxu0 %v392
      %461 = vmatpush.msra.mxu0 %v391
      %462 = vmatpush.msra.mxu0 %v390
      %463 = vmatmul.f32.gmra.mxu0 %v400
      %v464 = vpop.f32.mrf.mxu0
      %v465 = vadd.f32 %v396, %v464
      %466 = vmatmul.f32.gmra.mxu0 %v403
      %v467 = vpop.f32.mrf.mxu0
      %v468 = vadd.f32 %v396, %v467
      %469 = vmatmul.f32.gmra.mxu0 %v406
      %v470 = vpop.f32.mrf.mxu0
      %v471 = vadd.f32 %v396, %v470
      %472 = vmatmul.f32.gmra.mxu0 %v409
      %v473 = vpop.f32.mrf.mxu0
      %v474 = vadd.f32 %v396, %v473
      %475 = vmatmul.f32.gmra.mxu0 %v412
      %v476 = vpop.f32.mrf.mxu0
      %v477 = vadd.f32 %v396, %v476
      %478 = vmatmul.f32.gmra.mxu0 %v415
      %v479 = vpop.f32.mrf.mxu0
      %v480 = vadd.f32 %v396, %v479
      %481 = vmatmul.f32.gmra.mxu0 %v418
      %v482 = vpop.f32.mrf.mxu0
      %v483 = vadd.f32 %v396, %v482
      %484 = vmatmul.f32.gmra.mxu0 %v421
      %v485 = vpop.f32.mrf.mxu0
      %v486 = vadd.f32 %v396, %v485
      %487 = vmatmul.f32.gmra.mxu0 %v424
      %v488 = vpop.f32.mrf.mxu0
      %v489 = vadd.f32 %v396, %v488
      %490 = vmatmul.f32.gmra.mxu0 %v427
      %v491 = vpop.f32.mrf.mxu0
      %v492 = vadd.f32 %v396, %v491
      %493 = vmatmul.f32.gmra.mxu0 %v430
      %v494 = vpop.f32.mrf.mxu0
      %v495 = vadd.f32 %v396, %v494
      %496 = vmatmul.f32.gmra.mxu0 %v433
      %v497 = vpop.f32.mrf.mxu0
      %v498 = vadd.f32 %v396, %v497
      %499 = vmatmul.f32.gmra.mxu0 %v436
      %v500 = vpop.f32.mrf.mxu0
      %v501 = vadd.f32 %v396, %v500
      %502 = vmatmul.f32.gmra.mxu0 %v439
      %v503 = vpop.f32.mrf.mxu0
      %v504 = vadd.f32 %v396, %v503
      %505 = vmatmul.f32.gmra.mxu0 %v442
      %v506 = vpop.f32.mrf.mxu0
      %v507 = vadd.f32 %v396, %v506
      %508 = vmatmul.f32.gmra.mxu0 %v445
      %v509 = vpop.f32.mrf.mxu0
      %v510 = vadd.f32 %v396, %v509
      %511 = vdwg.mxu0
      %v512 = vmul.f32 %v465, 0.01
      %v513 = vmul.f32 %v468, 0.01
      %v514 = vmul.f32 %v471, 0.01
      %v515 = vmul.f32 %v474, 0.01
      %v516 = vmul.f32 %v477, 0.01
      %v517 = vmul.f32 %v480, 0.01
      %v518 = vmul.f32 %v483, 0.01
      %v519 = vmul.f32 %v486, 0.01
      %v520 = vmul.f32 %v489, 0.01
      %v521 = vmul.f32 %v492, 0.01
      %v522 = vmul.f32 %v495, 0.01
      %v523 = vmul.f32 %v498, 0.01
      %v524 = vmul.f32 %v501, 0.01
      %v525 = vmul.f32 %v504, 0.01
      %v526 = vmul.f32 %v507, 0.01
      %v527 = vmul.f32 %v510, 0.01
      %v528 = vmax.f32 %v465, %v512
      %v529 = vmax.f32 %v468, %v513
      %v530 = vmax.f32 %v471, %v514
      %v531 = vmax.f32 %v474, %v515
      %v532 = vmax.f32 %v477, %v516
      %v533 = vmax.f32 %v480, %v517
      %v534 = vmax.f32 %v483, %v518
      %v535 = vmax.f32 %v486, %v519
      %v536 = vmax.f32 %v489, %v520
      %v537 = vmax.f32 %v492, %v521
      %v538 = vmax.f32 %v495, %v522
      %v539 = vmax.f32 %v498, %v523
      %v540 = vmax.f32 %v501, %v524
      %v541 = vmax.f32 %v504, %v525
      %v542 = vmax.f32 %v507, %v526
      %v543 = vmax.f32 %v510, %v527
      %v544 = vld [vmem:[%s4] sm:$0xff]
      %v545 = vld [vmem:[%s4 + $0x8] sm:$0xff]
      %v546 = vld [vmem:[%s4 + $0x10] sm:$0xff]
      %v547 = vld [vmem:[%s4 + $0x18] sm:$0xff]
      %v548 = vld [vmem:[%s4 + $0x20] sm:$0xff]
      %v549 = vld [vmem:[%s4 + $0x28] sm:$0xff]
      %v550 = vld [vmem:[%s4 + $0x30] sm:$0xff]
      %v551 = vld [vmem:[%s4 + $0x38] sm:$0xff]
      %v552 = vld [vmem:[%s4 + $0x40] sm:$0xff]
      %v553 = vld [vmem:[%s4 + $0x48] sm:$0xff]
      %v554 = vld [vmem:[%s4 + $0x50] sm:$0xff]
      %v555 = vld [vmem:[%s4 + $0x58] sm:$0xff]
      %v556 = vld [vmem:[%s4 + $0x60] sm:$0xff]
      %v557 = vld [vmem:[%s4 + $0x68] sm:$0xff]
      %v558 = vld [vmem:[%s4 + $0x70] sm:$0xff]
      %v559 = vld [vmem:[%s4 + $0x78] sm:$0xff]
      %v560 = vld [vmem:[%s5] sm:$0x1]
      %v562 = vperm.slane %v560, 0
      %564 = vmatpush.msra.mxu0 %v559
      %565 = vmatpush.msra.mxu0 %v558
      %566 = vmatpush.msra.mxu0 %v557
      %567 = vmatpush.msra.mxu0 %v556
      %568 = vmatpush.msra.mxu0 %v555
      %569 = vmatpush.msra.mxu0 %v554
      %570 = vmatpush.msra.mxu0 %v553
      %571 = vmatpush.msra.mxu0 %v552
      %572 = vmatpush.msra.mxu0 %v551
      %573 = vmatpush.msra.mxu0 %v550
      %574 = vmatpush.msra.mxu0 %v549
      %575 = vmatpush.msra.mxu0 %v548
      %576 = vmatpush.msra.mxu0 %v547
      %577 = vmatpush.msra.mxu0 %v546
      %578 = vmatpush.msra.mxu0 %v545
      %579 = vmatpush.msra.mxu0 %v544
      %580 = vmatmul.f32.gmra.mxu0 %v528
      %v581 = vpop.f32.mrf.mxu0
      %v582 = vadd.f32 %v562, %v581
      %583 = vmatmul.f32.gmra.mxu0 %v529
      %v584 = vpop.f32.mrf.mxu0
      %v585 = vadd.f32 %v562, %v584
      %586 = vmatmul.f32.gmra.mxu0 %v530
      %v587 = vpop.f32.mrf.mxu0
      %v588 = vadd.f32 %v562, %v587
      %589 = vmatmul.f32.gmra.mxu0 %v531
      %v590 = vpop.f32.mrf.mxu0
      %v591 = vadd.f32 %v562, %v590
      %592 = vmatmul.f32.gmra.mxu0 %v532
      %v593 = vpop.f32.mrf.mxu0
      %v594 = vadd.f32 %v562, %v593
      %595 = vmatmul.f32.gmra.mxu0 %v533
      %v596 = vpop.f32.mrf.mxu0
      %v597 = vadd.f32 %v562, %v596
      %598 = vmatmul.f32.gmra.mxu0 %v534
      %v599 = vpop.f32.mrf.mxu0
      %v600 = vadd.f32 %v562, %v599
      %601 = vmatmul.f32.gmra.mxu0 %v535
      %v602 = vpop.f32.mrf.mxu0
      %v603 = vadd.f32 %v562, %v602
      %604 = vmatmul.f32.gmra.mxu0 %v536
      %v605 = vpop.f32.mrf.mxu0
      %v606 = vadd.f32 %v562, %v605
      %607 = vmatmul.f32.gmra.mxu0 %v537
      %v608 = vpop.f32.mrf.mxu0
      %v609 = vadd.f32 %v562, %v608
      %610 = vmatmul.f32.gmra.mxu0 %v538
      %v611 = vpop.f32.mrf.mxu0
      %v612 = vadd.f32 %v562, %v611
      %613 = vmatmul.f32.gmra.mxu0 %v539
      %v614 = vpop.f32.mrf.mxu0
      %v615 = vadd.f32 %v562, %v614
      %616 = vmatmul.f32.gmra.mxu0 %v540
      %v617 = vpop.f32.mrf.mxu0
      %v618 = vadd.f32 %v562, %v617
      %619 = vmatmul.f32.gmra.mxu0 %v541
      %v620 = vpop.f32.mrf.mxu0
      %v621 = vadd.f32 %v562, %v620
      %622 = vmatmul.f32.gmra.mxu0 %v542
      %v623 = vpop.f32.mrf.mxu0
      %v624 = vadd.f32 %v562, %v623
      %625 = vmatmul.f32.gmra.mxu0 %v543
      %v626 = vpop.f32.mrf.mxu0
      %v627 = vadd.f32 %v562, %v626
      %628 = vdwg.mxu0
      %629 = vst.msk [vmem:[%s275] sm:$0xff] %vm373, %v582
      %630 = vst.msk [vmem:[%s275 + $0x8] sm:$0xff] %vm373, %v585
      %631 = vst.msk [vmem:[%s275 + $0x10] sm:$0xff] %vm373, %v588
      %632 = vst.msk [vmem:[%s275 + $0x18] sm:$0xff] %vm373, %v591
      %633 = vst.msk [vmem:[%s275 + $0x20] sm:$0xff] %vm373, %v594
      %634 = vst.msk [vmem:[%s275 + $0x28] sm:$0xff] %vm373, %v597
      %635 = vst.msk [vmem:[%s275 + $0x30] sm:$0xff] %vm373, %v600
      %636 = vst.msk [vmem:[%s275 + $0x38] sm:$0xff] %vm373, %v603
      %637 = vst.msk [vmem:[%s275 + $0x40] sm:$0xff] %vm373, %v606
      %638 = vst.msk [vmem:[%s275 + $0x48] sm:$0xff] %vm373, %v609
      %639 = vst.msk [vmem:[%s275 + $0x50] sm:$0xff] %vm373, %v612
      %640 = vst.msk [vmem:[%s275 + $0x58] sm:$0xff] %vm373, %v615
      %641 = vst.msk [vmem:[%s275 + $0x60] sm:$0xff] %vm373, %v618
      %642 = vst.msk [vmem:[%s275 + $0x68] sm:$0xff] %vm373, %v621
      %643 = vst.msk [vmem:[%s275 + $0x70] sm:$0xff] %vm373, %v624
      %644 = vst.msk [vmem:[%s275 + $0x78] sm:$0xff] %vm373, %v627
      %s645 = smul.u32 16, %s17
      %p646 = scmp.lt.s32.totalorder %s645, 31
      %s647 = scalar_select %p646, %s645, 31
      %s648 = smul.addr %s647, 8
      %s649 = scalar_lea.vmem %s6, %s648
      // Predicated region
      $region45: #{tpu_custom_call.1} parent=43 // pred_check
        %p650 = pneg %p171
      $region46: #{tpu_custom_call.1} parent=43 // pred_check_branch
        %652 = sbr.rel (%p650) target = $region48
      $region47: #{tpu_custom_call.1} parent=43 // pred_region
        %s653 = smul.u32 16, %s17
      $region48: #{tpu_custom_call.1} parent=43 // pred_fallthru
        _
    $region44: #{tpu_custom_call.1} parent=5 // pred_fallthru
      _
    %p654 = scmp.le.s32.totalorder 2, %s12
    // Predicated region
    $region49: #{tpu_custom_call.1} parent=5 // pred_check
      %p655 = pneg %p654
    $region50: #{tpu_custom_call.1} parent=5 // pred_check_branch
      %657 = sbr.rel (%p655) target = $region52
    $region51: #{tpu_custom_call.1} parent=5 // pred_region
      %s658 = ssub.s32 %s12, 2
      // Predicated region
      $region53: #{tpu_custom_call.1} parent=51 // pred_check
        %p659 = pneg %p177
      $region54: #{tpu_custom_call.1} parent=51 // pred_check_branch
        %661 = sbr.rel (%p659) target = $region56
      $region55: #{tpu_custom_call.1} parent=51 // pred_region
        %s662 = smul.u32 16, %s18
        %p663 = scmp.lt.s32.totalorder %s662, 31
        %s664 = scalar_select %p663, %s662, 31
        %s665 = smul.addr %s664, 8
        %s666 = scalar_lea.vmem %s6, %s665
      $region56: #{tpu_custom_call.1} parent=51 // pred_fallthru
        _
    $region52: #{tpu_custom_call.1} parent=5 // pred_fallthru
      _
  $region6: #{tpu_custom_call.1} parent=0 // loop_footer
    %s16 = sadd.s32 1, %s12
  $region7: #{tpu_custom_call.1} parent=0 // loop_footer_branch
    %11 = sbr.rel target = $region3
  $region8: #{tpu_custom_call.1} parent=0 // loop_exit
    _

</llo_original>
